<compile_context>
chip_gen: v6e
topology: v6e:2x2x1
jax: 0.10.0
libtpu: 0.0.40
codegen_flags: <defaults>
</compile_context>

<pallas_src>
import jax
import jax.numpy as jnp
from jax.experimental import pallas as pl
from jax.experimental.pallas import tpu as pltpu

_LANES = 128


def _round8(n):
    return -(-n // 8) * 8


def _weight_layout(n_class, n_hidden):
    """Row offsets of every weight/bias block inside the packed [rows, 128]
    slab. Each block starts on a sublane (8-row) boundary."""
    C, H = n_class, n_hidden
    blocks = [
        ("wih_e", C), ("whh_e", H),       # encoder RNN (pre-transposed)
        ("wih_d", C), ("whh_d", H),       # decoder RNN (pre-transposed)
        ("wattn", H),                     # attn Linear (pre-transposed)
        ("wout_cat", H),                  # out Linear as [W_dec | W_ctx], [H, 2C]
        ("b_e", 1), ("b_d", 1), ("battn", 1), ("bout", 1),
    ]
    offs, row = {}, 0
    for name, r in blocks:
        offs[name] = row
        row += _round8(r)
    return offs, row


def prepack_params(params):
    """One-time host-side packing of all weights/biases into a single
    lane-dense f32 [rows, 128] slab (removes per-call transposes and
    collapses 12 weight/bias inputs into one DMA)."""
    H, C = params["enc_w_ih"].shape        # [n_hidden, n_class]
    assert H <= _LANES and 2 * C <= _LANES
    offs, rows = _weight_layout(C, H)
    slab = jnp.zeros((rows, _LANES), jnp.float32)

    def put(s, name, mat):
        mat = jnp.asarray(mat, jnp.float32)
        r, c = mat.shape
        return s.at[offs[name]:offs[name] + r, 0:c].set(mat)

    out_w = jnp.asarray(params["out_w"], jnp.float32)                 # [C, 2H]
    wout_cat = jnp.concatenate([out_w[:, :H].T, out_w[:, H:].T], 1)   # [H, 2C]

    slab = put(slab, "wih_e", params["enc_w_ih"].T)                   # [C, H]
    slab = put(slab, "whh_e", params["enc_w_hh"].T)                   # [H, H]
    slab = put(slab, "wih_d", params["dec_w_ih"].T)
    slab = put(slab, "whh_d", params["dec_w_hh"].T)
    slab = put(slab, "wattn", params["attn_w"].T)
    slab = put(slab, "wout_cat", wout_cat)
    slab = put(slab, "b_e", (params["enc_b_ih"] + params["enc_b_hh"])[None, :])
    slab = put(slab, "b_d", (params["dec_b_ih"] + params["dec_b_hh"])[None, :])
    slab = put(slab, "battn", params["attn_b"][None, :])
    slab = put(slab, "bout", params["out_b"][None, :])
    return slab


def _make_kernel(S_enc, S_dec, C, H, offs):
    f32 = jnp.float32

    def kernel(x_ref, w_ref, out_ref):
        # ---- unpack activations (static slices, lane offset 0) --------------
        enc_x = x_ref[0:S_enc, 0:C]                              # [S_enc, C]
        dec_x = x_ref[S_enc:S_enc + S_dec, 0:C]                  # [S_dec, C]
        h0 = x_ref[S_enc + S_dec:S_enc + S_dec + 1, 0:H]         # [1, H]

        # ---- unpack weights (hoisted, loaded once) ---------------------------
        def blk(name, r, c):
            o = offs[name]
            return w_ref[o:o + r, 0:c]

        wih_e = blk("wih_e", C, H)
        whh_e = blk("whh_e", H, H)
        wih_d = blk("wih_d", C, H)
        whh_d = blk("whh_d", H, H)
        wattn = blk("wattn", H, H)
        wout_cat = blk("wout_cat", H, 2 * C)                     # [H, 2C]
        b_e = blk("b_e", 1, H)
        b_d = blk("b_d", 1, H)
        battn = blk("battn", 1, H)
        bout = blk("bout", 1, C)

        # ---- encoder ---------------------------------------------------------
        # Input projection hoisted out of the recurrence (one MXU matmul).
        x_proj = jnp.dot(enc_x, wih_e, preferred_element_type=f32) + b_e

        # Serial (unavoidable) part: h_t = tanh(X[t] + h_{t-1} @ W_hh).
        h = h0
        hs = []
        for t in range(S_enc):                                   # small static unroll
            h = jnp.tanh(x_proj[t:t + 1, :]
                         + jnp.dot(h, whh_e, preferred_element_type=f32))
            hs.append(h)
        enc_out = jnp.concatenate(hs, axis=0)                    # [S_enc, H] vreg-resident
        enc_h = h                                                # [1, H]

        # ---- decoder (fully batched; module never updates dec_hidden) -------
        D = jnp.tanh(jnp.dot(dec_x, wih_d, preferred_element_type=f32)
                     + jnp.dot(enc_h, whh_d, preferred_element_type=f32)
                     + b_d)                                      # [S_dec, H]

        keys = jnp.dot(enc_out, wattn, preferred_element_type=f32) + battn   # [S_enc, H]
        scores = jax.lax.dot_general(                            # D @ keys.T (trans_b free)
            D, keys, dimension_numbers=(((1,), (1,)), ((), ())),
            preferred_element_type=f32)                          # [S_dec, S_enc]

        # row-wise softmax; EUP approx reciprocal + 1 Newton step (f32-accurate)
        m = jnp.max(scores, axis=1, keepdims=True)
        e = jnp.exp(scores - m)
        denom = jnp.sum(e, axis=1, keepdims=True)
        r = pl.reciprocal(denom, approx=True)
        r = r * (2.0 - denom * r)
        attn_w = e * r                                           # [S_dec, S_enc]

        context = jnp.dot(attn_w, enc_out, preferred_element_type=f32)       # [S_dec, H]

        # ---- output head: ONE MXU matmul -------------------------------------
        # model = D @ W_dec + context @ W_ctx.  Row-stack the activations and
        # multiply by the lane-stacked weight [W_dec | W_ctx]; the two useful
        # blocks sit on the diagonal of the [2*S_dec, 2C] result.
        dc = jnp.concatenate([D, context], axis=0)                            # [2*S_dec, H]
        prod = jnp.dot(dc, wout_cat, preferred_element_type=f32)              # [2*S_dec, 2C]
        model = prod[0:S_dec, 0:C] + prod[S_dec:2 * S_dec, C:2 * C] + bout    # [S_dec, C]

        # ---- single lane-dense output slab (one writeback DMA) ---------------
        out_ref[...] = jnp.zeros((2 * S_dec, _LANES), f32)
        out_ref[0:S_dec, 0:C] = model
        out_ref[S_dec:2 * S_dec, 0:S_enc] = attn_w

    return kernel


@jax.jit
def attention_forward(enc_inputs, hidden, dec_inputs, w_slab):
    """enc_inputs [1,S_enc,C], hidden [1,1,H], dec_inputs [1,S_dec,C],
       w_slab = prepack_params(params)
       -> (model [S_dec,C], attn [S_dec,S_enc])"""
    enc_x = enc_inputs[0].astype(jnp.float32)
    dec_x = dec_inputs[0].astype(jnp.float32)
    h0 = hidden[0].astype(jnp.float32)
    S_enc, C = enc_x.shape
    S_dec = dec_x.shape[0]
    H = h0.shape[1]
    offs, w_rows = _weight_layout(C, H)
    assert w_slab.shape == (w_rows, _LANES)
    assert H <= _LANES and C <= _LANES and S_enc <= _LANES

    # Pack activations into one lane-dense slab (fuses to a single producer
    # under jit; feeds a single input DMA).
    x_rows = S_enc + S_dec + 1
    x_slab = jnp.zeros((x_rows, _LANES), jnp.float32)
    x_slab = x_slab.at[0:S_enc, 0:C].set(enc_x)
    x_slab = x_slab.at[S_enc:S_enc + S_dec, 0:C].set(dec_x)
    x_slab = x_slab.at[S_enc + S_dec:S_enc + S_dec + 1, 0:H].set(h0)

    out_rows = 2 * S_dec
    flops = 2 * (S_enc * C * H + S_enc * H * H          # encoder
                 + S_dec * C * H + H * H                # decoder cell
                 + S_enc * H * H                        # attn keys
                 + 2 * S_dec * S_enc * H                # scores + context
                 + 2 * S_dec * H * 2 * C)               # output head
    transcendentals = (S_enc + S_dec) * H + S_dec * S_enc + S_dec
    bytes_accessed = 4 * _LANES * (x_rows + w_rows + out_rows)

    out = pl.pallas_call(
        _make_kernel(S_enc, S_dec, C, H, offs),
        out_shape=jax.ShapeDtypeStruct((out_rows, _LANES), jnp.float32),
        in_specs=[pl.BlockSpec(memory_space=pltpu.MemorySpace.VMEM)] * 2,
        out_specs=pl.BlockSpec(memory_space=pltpu.MemorySpace.VMEM),
        cost_estimate=pl.CostEstimate(flops=flops,
                                      transcendentals=transcendentals,
                                      bytes_accessed=bytes_accessed),
    )(x_slab, w_slab)

    model = out[0:S_dec, 0:C]
    attn = out[S_dec:2 * S_dec, 0:S_enc]
    return model, attn


# ---------------- pure-JAX reference (mirrors the PyTorch math) -------------
def attention_reference(enc_inputs, hidden, dec_inputs, params):
    enc_x = enc_inputs[0]
    dec_x = dec_inputs[0]
    h = hidden[0]
    enc_outs = []
    for t in range(enc_x.shape[0]):
        h = jnp.tanh(enc_x[t:t + 1] @ params["enc_w_ih"].T + params["enc_b_ih"]
                     + h @ params["enc_w_hh"].T + params["enc_b_hh"])
        enc_outs.append(h)
    enc_out = jnp.concatenate(enc_outs, axis=0)
    enc_h = h
    keys = enc_out @ params["attn_w"].T + params["attn_b"]
    outs, attns = [], []
    for i in range(dec_x.shape[0]):
        d = jnp.tanh(dec_x[i:i + 1] @ params["dec_w_ih"].T + params["dec_b_ih"]
                     + enc_h @ params["dec_w_hh"].T + params["dec_b_hh"])
        scores = (keys * d).sum(axis=1)
        w = jax.nn.softmax(scores)
        context = w[None, :] @ enc_out
        o = jnp.concatenate([d, context], axis=1) @ params["out_w"].T + params["out_b"]
        outs.append(o)
        attns.append(w[None, :])
    return jnp.concatenate(outs, axis=0), jnp.concatenate(attns, axis=0)


def init_params(key, n_class, n_hidden):
    """Deterministic params with PyTorch-like uniform init."""
    ks = jax.random.split(key, 12)
    s_rnn = 1.0 / jnp.sqrt(n_hidden)
    s_attn = 1.0 / jnp.sqrt(n_hidden)
    s_out = 1.0 / jnp.sqrt(2 * n_hidden)
    u = lambda k, shape, s: jax.random.uniform(k, shape, jnp.float32, -s, s)
    return {
        "enc_w_ih": u(ks[0], (n_hidden, n_class), s_rnn),
        "enc_w_hh": u(ks[1], (n_hidden, n_hidden), s_rnn),
        "enc_b_ih": u(ks[2], (n_hidden,), s_rnn),
        "enc_b_hh": u(ks[3], (n_hidden,), s_rnn),
        "dec_w_ih": u(ks[4], (n_hidden, n_class), s_rnn),
        "dec_w_hh": u(ks[5], (n_hidden, n_hidden), s_rnn),
        "dec_b_ih": u(ks[6], (n_hidden,), s_rnn),
        "dec_b_hh": u(ks[7], (n_hidden,), s_rnn),
        "attn_w": u(ks[8], (n_hidden, n_hidden), s_attn),
        "attn_b": u(ks[9], (n_hidden,), s_attn),
        "out_w": u(ks[10], (n_class, 2 * n_hidden), s_out),
        "out_b": u(ks[11], (n_class,), s_out),
    }


if __name__ == "__main__":
    n_class, n_hidden, n_step, batch = 16, 32, 8, 1
    key = jax.random.PRNGKey(0)
    k_p, k_e, k_d, k_h = jax.random.split(key, 4)

    params = init_params(k_p, n_class, n_hidden)
    enc_inputs = jax.random.normal(k_e, (batch, n_step, n_class), jnp.float32)
    dec_inputs = jax.random.normal(k_d, (batch, n_step, n_class), jnp.float32)
    hidden = jax.random.normal(k_h, (1, batch, n_hidden), jnp.float32)

    # One-time weight packing (off the per-call path).
    w_slab = prepack_params(params)

    model, trained_attn = attention_forward(enc_inputs, hidden, dec_inputs, w_slab)
    jax.block_until_ready((model, trained_attn))

    ref_model, ref_attn = attention_reference(enc_inputs, hidden, dec_inputs, params)
    assert model.shape == (n_step, n_class)
    assert trained_attn.shape == (n_step, n_step)
    assert jnp.allclose(model, ref_model, rtol=1e-5, atol=1e-5)
    assert jnp.allclose(trained_attn, ref_attn, rtol=1e-5, atol=1e-5)

    print("KERNEL_OK")
</pallas_src>

<mosaic_0001>
module attributes {stable_mosaic.version = 11 : i64} {
  func.func @kernel(%arg0: memref<17x128xf32, #tpu.memory_space<vmem>>, %arg1: memref<192x128xf32, #tpu.memory_space<vmem>>, %arg2: memref<16x128xf32, #tpu.memory_space<vmem>>) attributes {dimension_semantics = [], scalar_prefetch = 0 : i64, scratch_operands = 0 : i64, tpu.core_type = #tpu.core_type<tc>} {
    %c0 = arith.constant 0 : index
    %c0_0 = arith.constant 0 : index
    %0 = vector.load %arg0[%c0, %c0_0] : memref<17x128xf32, #tpu.memory_space<vmem>>, vector<8x16xf32>
    %c8 = arith.constant 8 : index
    %c0_1 = arith.constant 0 : index
    %1 = vector.load %arg0[%c8, %c0_1] : memref<17x128xf32, #tpu.memory_space<vmem>>, vector<8x16xf32>
    %c16 = arith.constant 16 : index
    %c0_2 = arith.constant 0 : index
    %2 = vector.load %arg0[%c16, %c0_2] : memref<17x128xf32, #tpu.memory_space<vmem>>, vector<1x32xf32>
    %c0_3 = arith.constant 0 : index
    %c0_4 = arith.constant 0 : index
    %3 = vector.load %arg1[%c0_3, %c0_4] : memref<192x128xf32, #tpu.memory_space<vmem>>, vector<16x32xf32>
    %c16_5 = arith.constant 16 : index
    %c0_6 = arith.constant 0 : index
    %4 = vector.load %arg1[%c16_5, %c0_6] : memref<192x128xf32, #tpu.memory_space<vmem>>, vector<32x32xf32>
    %c48 = arith.constant 48 : index
    %c0_7 = arith.constant 0 : index
    %5 = vector.load %arg1[%c48, %c0_7] : memref<192x128xf32, #tpu.memory_space<vmem>>, vector<16x32xf32>
    %c64 = arith.constant 64 : index
    %c0_8 = arith.constant 0 : index
    %6 = vector.load %arg1[%c64, %c0_8] : memref<192x128xf32, #tpu.memory_space<vmem>>, vector<32x32xf32>
    %c96 = arith.constant 96 : index
    %c0_9 = arith.constant 0 : index
    %7 = vector.load %arg1[%c96, %c0_9] : memref<192x128xf32, #tpu.memory_space<vmem>>, vector<32x32xf32>
    %c128 = arith.constant 128 : index
    %c0_10 = arith.constant 0 : index
    %8 = vector.load %arg1[%c128, %c0_10] : memref<192x128xf32, #tpu.memory_space<vmem>>, vector<32x32xf32>
    %c160 = arith.constant 160 : index
    %c0_11 = arith.constant 0 : index
    %9 = vector.load %arg1[%c160, %c0_11] : memref<192x128xf32, #tpu.memory_space<vmem>>, vector<1x32xf32>
    %c168 = arith.constant 168 : index
    %c0_12 = arith.constant 0 : index
    %10 = vector.load %arg1[%c168, %c0_12] : memref<192x128xf32, #tpu.memory_space<vmem>>, vector<1x32xf32>
    %c176 = arith.constant 176 : index
    %c0_13 = arith.constant 0 : index
    %11 = vector.load %arg1[%c176, %c0_13] : memref<192x128xf32, #tpu.memory_space<vmem>>, vector<1x32xf32>
    %c184 = arith.constant 184 : index
    %c0_14 = arith.constant 0 : index
    %12 = vector.load %arg1[%c184, %c0_14] : memref<192x128xf32, #tpu.memory_space<vmem>>, vector<1x16xf32>
    %cst = arith.constant dense<0.000000e+00> : vector<8x32xf32>
    %13 = tpu.matmul %0, %3, %cst {dimension_numbers = #tpu.dot_dimension_numbers<[1], [0], [0], [1], [0, 0, 1, 1], [], []>} : vector<8x16xf32>, vector<16x32xf32>, vector<8x32xf32> -> vector<8x32xf32>
    %14 = vector.broadcast %9 : vector<1x32xf32> to vector<8x32xf32>
    %15 = arith.addf %13, %14 : vector<8x32xf32>
    %16 = vector.extract_strided_slice %15 {offsets = [0, 0], sizes = [1, 32], strides = [1, 1]} : vector<8x32xf32> to vector<1x32xf32>
    %cst_15 = arith.constant dense<0.000000e+00> : vector<1x32xf32>
    %17 = tpu.matmul %2, %4, %cst_15 {dimension_numbers = #tpu.dot_dimension_numbers<[1], [0], [0], [1], [0, 0, 1, 1], [], []>} : vector<1x32xf32>, vector<32x32xf32>, vector<1x32xf32> -> vector<1x32xf32>
    %18 = arith.addf %16, %17 : vector<1x32xf32>
    %19 = math.tanh %18 : vector<1x32xf32>
    %20 = vector.extract_strided_slice %15 {offsets = [1, 0], sizes = [1, 32], strides = [1, 1]} : vector<8x32xf32> to vector<1x32xf32>
    %cst_16 = arith.constant dense<0.000000e+00> : vector<1x32xf32>
    %21 = tpu.matmul %19, %4, %cst_16 {dimension_numbers = #tpu.dot_dimension_numbers<[1], [0], [0], [1], [0, 0, 1, 1], [], []>} : vector<1x32xf32>, vector<32x32xf32>, vector<1x32xf32> -> vector<1x32xf32>
    %22 = arith.addf %20, %21 : vector<1x32xf32>
    %23 = math.tanh %22 : vector<1x32xf32>
    %24 = vector.extract_strided_slice %15 {offsets = [2, 0], sizes = [1, 32], strides = [1, 1]} : vector<8x32xf32> to vector<1x32xf32>
    %cst_17 = arith.constant dense<0.000000e+00> : vector<1x32xf32>
    %25 = tpu.matmul %23, %4, %cst_17 {dimension_numbers = #tpu.dot_dimension_numbers<[1], [0], [0], [1], [0, 0, 1, 1], [], []>} : vector<1x32xf32>, vector<32x32xf32>, vector<1x32xf32> -> vector<1x32xf32>
    %26 = arith.addf %24, %25 : vector<1x32xf32>
    %27 = math.tanh %26 : vector<1x32xf32>
    %28 = vector.extract_strided_slice %15 {offsets = [3, 0], sizes = [1, 32], strides = [1, 1]} : vector<8x32xf32> to vector<1x32xf32>
    %cst_18 = arith.constant dense<0.000000e+00> : vector<1x32xf32>
    %29 = tpu.matmul %27, %4, %cst_18 {dimension_numbers = #tpu.dot_dimension_numbers<[1], [0], [0], [1], [0, 0, 1, 1], [], []>} : vector<1x32xf32>, vector<32x32xf32>, vector<1x32xf32> -> vector<1x32xf32>
    %30 = arith.addf %28, %29 : vector<1x32xf32>
    %31 = math.tanh %30 : vector<1x32xf32>
    %32 = vector.extract_strided_slice %15 {offsets = [4, 0], sizes = [1, 32], strides = [1, 1]} : vector<8x32xf32> to vector<1x32xf32>
    %cst_19 = arith.constant dense<0.000000e+00> : vector<1x32xf32>
    %33 = tpu.matmul %31, %4, %cst_19 {dimension_numbers = #tpu.dot_dimension_numbers<[1], [0], [0], [1], [0, 0, 1, 1], [], []>} : vector<1x32xf32>, vector<32x32xf32>, vector<1x32xf32> -> vector<1x32xf32>
    %34 = arith.addf %32, %33 : vector<1x32xf32>
    %35 = math.tanh %34 : vector<1x32xf32>
    %36 = vector.extract_strided_slice %15 {offsets = [5, 0], sizes = [1, 32], strides = [1, 1]} : vector<8x32xf32> to vector<1x32xf32>
    %cst_20 = arith.constant dense<0.000000e+00> : vector<1x32xf32>
    %37 = tpu.matmul %35, %4, %cst_20 {dimension_numbers = #tpu.dot_dimension_numbers<[1], [0], [0], [1], [0, 0, 1, 1], [], []>} : vector<1x32xf32>, vector<32x32xf32>, vector<1x32xf32> -> vector<1x32xf32>
    %38 = arith.addf %36, %37 : vector<1x32xf32>
    %39 = math.tanh %38 : vector<1x32xf32>
    %40 = vector.extract_strided_slice %15 {offsets = [6, 0], sizes = [1, 32], strides = [1, 1]} : vector<8x32xf32> to vector<1x32xf32>
    %cst_21 = arith.constant dense<0.000000e+00> : vector<1x32xf32>
    %41 = tpu.matmul %39, %4, %cst_21 {dimension_numbers = #tpu.dot_dimension_numbers<[1], [0], [0], [1], [0, 0, 1, 1], [], []>} : vector<1x32xf32>, vector<32x32xf32>, vector<1x32xf32> -> vector<1x32xf32>
    %42 = arith.addf %40, %41 : vector<1x32xf32>
    %43 = math.tanh %42 : vector<1x32xf32>
    %44 = vector.extract_strided_slice %15 {offsets = [7, 0], sizes = [1, 32], strides = [1, 1]} : vector<8x32xf32> to vector<1x32xf32>
    %cst_22 = arith.constant dense<0.000000e+00> : vector<1x32xf32>
    %45 = tpu.matmul %43, %4, %cst_22 {dimension_numbers = #tpu.dot_dimension_numbers<[1], [0], [0], [1], [0, 0, 1, 1], [], []>} : vector<1x32xf32>, vector<32x32xf32>, vector<1x32xf32> -> vector<1x32xf32>
    %46 = arith.addf %44, %45 : vector<1x32xf32>
    %47 = math.tanh %46 : vector<1x32xf32>
    %48 = tpu.concatenate %19, %23, %27, %31, %35, %39, %43, %47 in 0 : vector<1x32xf32>, vector<1x32xf32>, vector<1x32xf32>, vector<1x32xf32>, vector<1x32xf32>, vector<1x32xf32>, vector<1x32xf32>, vector<1x32xf32> -> vector<8x32xf32>
    %cst_23 = arith.constant dense<0.000000e+00> : vector<8x32xf32>
    %49 = tpu.matmul %1, %5, %cst_23 {dimension_numbers = #tpu.dot_dimension_numbers<[1], [0], [0], [1], [0, 0, 1, 1], [], []>} : vector<8x16xf32>, vector<16x32xf32>, vector<8x32xf32> -> vector<8x32xf32>
    %cst_24 = arith.constant dense<0.000000e+00> : vector<1x32xf32>
    %50 = tpu.matmul %47, %6, %cst_24 {dimension_numbers = #tpu.dot_dimension_numbers<[1], [0], [0], [1], [0, 0, 1, 1], [], []>} : vector<1x32xf32>, vector<32x32xf32>, vector<1x32xf32> -> vector<1x32xf32>
    %51 = vector.broadcast %50 : vector<1x32xf32> to vector<8x32xf32>
    %52 = arith.addf %49, %51 : vector<8x32xf32>
    %53 = vector.broadcast %10 : vector<1x32xf32> to vector<8x32xf32>
    %54 = arith.addf %52, %53 : vector<8x32xf32>
    %55 = math.tanh %54 : vector<8x32xf32>
    %cst_25 = arith.constant dense<0.000000e+00> : vector<8x32xf32>
    %56 = tpu.matmul %48, %7, %cst_25 {dimension_numbers = #tpu.dot_dimension_numbers<[1], [0], [0], [1], [0, 0, 1, 1], [], []>} : vector<8x32xf32>, vector<32x32xf32>, vector<8x32xf32> -> vector<8x32xf32>
    %57 = vector.broadcast %11 : vector<1x32xf32> to vector<8x32xf32>
    %58 = arith.addf %56, %57 : vector<8x32xf32>
    %cst_26 = arith.constant dense<0.000000e+00> : vector<8x8xf32>
    %59 = tpu.matmul %55, %58, %cst_26 {dimension_numbers = #tpu.dot_dimension_numbers<[1], [1], [0], [0], [0, 0, 1, 0], [], []>} : vector<8x32xf32>, vector<8x32xf32>, vector<8x8xf32> -> vector<8x8xf32>
    %cst_27 = arith.constant dense<0xFF800000> : vector<8xf32>
    %60 = vector.multi_reduction <maximumf>, %59, %cst_27 [1] : vector<8x8xf32> to vector<8xf32>
    %61 = vector.shape_cast %60 : vector<8xf32> to vector<8x1xf32>
    %62 = vector.broadcast %61 : vector<8x1xf32> to vector<8x8xf32>
    %63 = arith.subf %59, %62 : vector<8x8xf32>
    %64 = math.exp %63 : vector<8x8xf32>
    %cst_28 = arith.constant dense<0.000000e+00> : vector<8xf32>
    %65 = vector.multi_reduction <add>, %64, %cst_28 [1] : vector<8x8xf32> to vector<8xf32>
    %66 = vector.shape_cast %65 : vector<8xf32> to vector<8x1xf32>
    %67 = tpu.reciprocal %66 {approx = true} : vector<8x1xf32> -> vector<8x1xf32>
    %68 = arith.mulf %66, %67 : vector<8x1xf32>
    %cst_29 = arith.constant 2.000000e+00 : f32
    %69 = vector.broadcast %cst_29 : f32 to vector<8x1xf32>
    %70 = arith.subf %69, %68 : vector<8x1xf32>
    %71 = arith.mulf %67, %70 : vector<8x1xf32>
    %72 = vector.broadcast %71 : vector<8x1xf32> to vector<8x8xf32>
    %73 = arith.mulf %64, %72 : vector<8x8xf32>
    %cst_30 = arith.constant dense<0.000000e+00> : vector<8x32xf32>
    %74 = tpu.matmul %73, %48, %cst_30 {dimension_numbers = #tpu.dot_dimension_numbers<[1], [0], [0], [1], [0, 0, 1, 1], [], []>} : vector<8x8xf32>, vector<8x32xf32>, vector<8x32xf32> -> vector<8x32xf32>
    %75 = tpu.concatenate %55, %74 in 0 : vector<8x32xf32>, vector<8x32xf32> -> vector<16x32xf32>
    %cst_31 = arith.constant dense<0.000000e+00> : vector<16x32xf32>
    %76 = tpu.matmul %75, %8, %cst_31 {dimension_numbers = #tpu.dot_dimension_numbers<[1], [0], [0], [1], [0, 0, 1, 1], [], []>} : vector<16x32xf32>, vector<32x32xf32>, vector<16x32xf32> -> vector<16x32xf32>
    %77 = vector.extract_strided_slice %76 {offsets = [0, 0], sizes = [8, 16], strides = [1, 1]} : vector<16x32xf32> to vector<8x16xf32>
    %78 = vector.extract_strided_slice %76 {offsets = [8, 16], sizes = [8, 16], strides = [1, 1]} : vector<16x32xf32> to vector<8x16xf32>
    %79 = arith.addf %77, %78 : vector<8x16xf32>
    %80 = vector.broadcast %12 : vector<1x16xf32> to vector<8x16xf32>
    %81 = arith.addf %79, %80 : vector<8x16xf32>
    %cst_32 = arith.constant 0.000000e+00 : f32
    %82 = vector.broadcast %cst_32 : f32 to vector<16x128xf32>
    %c0_33 = arith.constant 0 : index
    %c0_34 = arith.constant 0 : index
    %83 = vector.load %arg2[%c0_33, %c0_34] : memref<16x128xf32, #tpu.memory_space<vmem>>, vector<16x128xf32>
    tpu.vector_store %arg2[%c0_33, %c0_34], %82 {strides = array<i32>} : memref<16x128xf32, #tpu.memory_space<vmem>>, vector<16x128xf32>,
    %c0_35 = arith.constant 0 : index
    %c0_36 = arith.constant 0 : index
    %84 = vector.load %arg2[%c0_35, %c0_36] : memref<16x128xf32, #tpu.memory_space<vmem>>, vector<8x16xf32>
    tpu.vector_store %arg2[%c0_35, %c0_36], %81 {strides = array<i32>} : memref<16x128xf32, #tpu.memory_space<vmem>>, vector<8x16xf32>,
    %c8_37 = arith.constant 8 : index
    %c0_38 = arith.constant 0 : index
    %85 = vector.load %arg2[%c8_37, %c0_38] : memref<16x128xf32, #tpu.memory_space<vmem>>, vector<8x8xf32>
    tpu.vector_store %arg2[%c8_37, %c0_38], %73 {strides = array<i32>} : memref<16x128xf32, #tpu.memory_space<vmem>>, vector<8x8xf32>,
    return
  }
}

</mosaic_0001>

<llo_original>
// kernel: attention_forward.1
$region0: #{attention_forward.1}
  #allocation0 [shape = 'u32[]', space=smem, size = 0x4, offset = 0x4, fixed_abs, tag = 'smem constant byte address 0x4 - core index']
  #allocation1 [shape = 'u32[144,128]{1,0:T(1,128)}', space=vmem, size = 0x12000, scoped, tag = 'internal scratch']
  %s0 = inlined_call_operand.vmem [shape: f32[17,128], index: 0, kind: input, shape index: {}]
  %s1 = inlined_call_operand.hbm [shape: f32[192,128], index: 1, kind: input, shape index: {}]
  %s2 = inlined_call_operand.vmem [shape: f32[16,128], index: 2, kind: output, shape index: {}]
  %s3 = sld [smem:[#allocation0]]
  $region22: #{attention_forward.1} parent=0
    _
  %s5 = ssub.s32 1, %s3
  %s6 = scalar_select 0, %s5, %s3
  $region1: #{attention_forward.1} parent=0
    #allocation2 [shape = 'u8[98304]{0}', space=vmem, size = 0x18000, scoped, tag = 'input window, operand 1, single buffered']
    #allocation3 [shape = 's32[1]{0}', space=sflag, size = 0x4, scoped, tag = 'scoped memory for attention_forward.1']
    %7 = vsyncpa [#allocation3], 0
    // Predicated region
    $region2: #{attention_forward.1} parent=1 // pred_check
      _
    $region3: #{attention_forward.1} parent=1 // pred_check_branch
      %9 = sbr.rel (0) target = $region5
    $region4: #{attention_forward.1} parent=1 // pred_region
      _
    $region5: #{attention_forward.1} parent=1 // pred_fallthru
      _
    // Predicated region
    $region6: #{attention_forward.1} parent=1 // pred_check
      _
    $region7: #{attention_forward.1} parent=1 // pred_check_branch
      %11 = sbr.rel (0) target = $region9
    $region8: #{attention_forward.1} parent=1 // pred_region
      %s13 = ssub.s32 3072, 3072
      %14 = vsyncadd [#allocation3], %s13
      %s15 = sshll.u32 [#allocation2], 4
      %s16 = int_to_ptr.vmem [resolvable:$true] %s15
      %21 = dma.hbm_to_vmem [thread:$0]  %s1, 3072, %s16, [#allocation3], 128, 128, 8
    $region9: #{attention_forward.1} parent=1 // pred_fallthru
      _
    // Predicated region
    $region10: #{attention_forward.1} parent=1 // pred_check
      _
    $region11: #{attention_forward.1} parent=1 // pred_check_branch
      %23 = sbr.rel (0) target = $region13
    $region12: #{attention_forward.1} parent=1 // pred_region
      %24 = dma.done [#allocation3], 3072
    $region13: #{attention_forward.1} parent=1 // pred_fallthru
      _
    %v25 = vld [vmem:[%s0] sm:$0xff]
    %v26 = vld [vmem:[%s0 + $0x8] sm:$0xff]
    %v27 = vld [vmem:[%s0 + $0x10] sm:$0x1]
    %v28 = vld [vmem:[#allocation2] sm:$0xff]
    %v29 = vld [vmem:[#allocation2 + $0x8] sm:$0xff]
    %v30 = vld [vmem:[#allocation2 + $0x10] sm:$0xff]
    %v31 = vld [vmem:[#allocation2 + $0x18] sm:$0xff]
    %v32 = vld [vmem:[#allocation2 + $0x20] sm:$0xff]
    %v33 = vld [vmem:[#allocation2 + $0x28] sm:$0xff]
    %v34 = vld [vmem:[#allocation2 + $0x30] sm:$0xff]
    %v35 = vld [vmem:[#allocation2 + $0x38] sm:$0xff]
    %v36 = vld [vmem:[#allocation2 + $0x40] sm:$0xff]
    %v37 = vld [vmem:[#allocation2 + $0x48] sm:$0xff]
    %v38 = vld [vmem:[#allocation2 + $0x50] sm:$0xff]
    %v39 = vld [vmem:[#allocation2 + $0x58] sm:$0xff]
    %v40 = vld [vmem:[#allocation2 + $0x60] sm:$0xff]
    %v41 = vld [vmem:[#allocation2 + $0x68] sm:$0xff]
    %v42 = vld [vmem:[#allocation2 + $0x70] sm:$0xff]
    %v43 = vld [vmem:[#allocation2 + $0x78] sm:$0xff]
    %v44 = vld [vmem:[#allocation2 + $0x80] sm:$0xff]
    %v45 = vld [vmem:[#allocation2 + $0x88] sm:$0xff]
    %v46 = vld [vmem:[#allocation2 + $0x90] sm:$0xff]
    %v47 = vld [vmem:[#allocation2 + $0x98] sm:$0xff]
    %v48 = vld [vmem:[#allocation2 + $0xa0] sm:$0x1]
    %v49 = vld [vmem:[#allocation2 + $0xa8] sm:$0x1]
    %v50 = vld [vmem:[#allocation2 + $0xb0] sm:$0x1]
    %v51 = vld [vmem:[#allocation2 + $0xb8] sm:$0x1]
    %v52 = vlaneseq
    %v53 = vshrl.u32 %v52, 7
    %v54 = vsub.s32 0, %v53
    %v55 = vrot.slane %v48, %v54
    %vm56 = vcmask 130048
    %v58 = vsel %vm56, %v25, 0
    %60 = vmatprep.subr.mxu0 0.0
    %61 = vmatpush1.msra.mxu0 0.0
    %62 = vmatprep.subr.mxu0 0.0
    %63 = vmatpush1.msra.mxu0 0.0
    %64 = vmatprep.subr.mxu0 0.0
    %65 = vmatpush1.msra.mxu0 0.0
    %66 = vmatprep.subr.mxu0 0.0
    %67 = vmatpush1.msra.mxu0 0.0
    %68 = vmatprep.subr.mxu0 0.0
    %69 = vmatpush1.msra.mxu0 0.0
    %70 = vmatprep.subr.mxu0 0.0
    %71 = vmatpush1.msra.mxu0 0.0
    %72 = vmatprep.subr.mxu0 0.0
    %73 = vmatpush1.msra.mxu0 0.0
    %74 = vmatprep.subr.mxu0 0.0
    %75 = vmatpush1.msra.mxu0 0.0
    %76 = vmatprep.subr.mxu0 0.0
    %77 = vmatpush1.msra.mxu0 0.0
    %78 = vmatprep.subr.mxu0 0.0
    %79 = vmatpush1.msra.mxu0 0.0
    %80 = vmatprep.subr.mxu0 0.0
    %81 = vmatpush1.msra.mxu0 0.0
    %82 = vmatprep.subr.mxu0 0.0
    %83 = vmatpush1.msra.mxu0 0.0
    %84 = vmatprep.subr.mxu0 0.0
    %85 = vmatpush1.msra.mxu0 0.0
    %86 = vmatprep.subr.mxu0 0.0
    %87 = vmatpush1.msra.mxu0 0.0
    %88 = vmatprep.subr.mxu0 0.0
    %89 = vmatpush1.msra.mxu0 %v29
    %90 = vmatprep.subr.mxu0 0.0
    %91 = vmatpush1.msra.mxu0 %v28
    %92 = vmatprep.subr.mxu0 0.0
    %93 = vmatpush2.msra.mxu0 0.0
    %94 = vmatprep.subr.mxu0 0.0
    %95 = vmatpush2.msra.mxu0 0.0
    %96 = vmatprep.subr.mxu0 0.0
    %97 = vmatpush2.msra.mxu0 0.0
    %98 = vmatprep.subr.mxu0 0.0
    %99 = vmatpush2.msra.mxu0 0.0
    %100 = vmatprep.subr.mxu0 0.0
    %101 = vmatpush2.msra.mxu0 0.0
    %102 = vmatprep.subr.mxu0 0.0
    %103 = vmatpush2.msra.mxu0 0.0
    %104 = vmatprep.subr.mxu0 0.0
    %105 = vmatpush2.msra.mxu0 0.0
    %106 = vmatprep.subr.mxu0 0.0
    %107 = vmatpush2.msra.mxu0 0.0
    %108 = vmatprep.subr.mxu0 0.0
    %109 = vmatpush2.msra.mxu0 0.0
    %110 = vmatprep.subr.mxu0 0.0
    %111 = vmatpush2.msra.mxu0 0.0
    %112 = vmatprep.subr.mxu0 0.0
    %113 = vmatpush2.msra.mxu0 0.0
    %114 = vmatprep.subr.mxu0 0.0
    %115 = vmatpush2.msra.mxu0 0.0
    %116 = vmatprep.subr.mxu0 0.0
    %117 = vmatpush2.msra.mxu0 0.0
    %118 = vmatprep.subr.mxu0 0.0
    %119 = vmatpush2.msra.mxu0 0.0
    %120 = vmatprep.subr.mxu0 0.0
    %121 = vmatpush2.msra.mxu0 0.0
    %122 = vmatprep.subr.mxu0 0.0
    %123 = vmatpush2.msra.mxu0 0.0
    %124 = vmatprep.mubr.f32.mxu0 0.0
    %125 = vmatmul.mubr.f32.gmra.mxu0 %v58
    %v126 = vpop.f32.mrf.mxu0
    %v127 = vadd.f32 %v55, %v126
    %v128 = vpop.f32.mrf.mxu0
    %129 = vdwg.mxu0
    %vm130 = vcmask 261120
    %v132 = vsel %vm130, %v27, 0
    %134 = vmatprep.subr.mxu0 0.0
    %135 = vmatpush1.msra.mxu0 0.0
    %136 = vmatprep.subr.mxu0 0.0
    %137 = vmatpush1.msra.mxu0 0.0
    %138 = vmatprep.subr.mxu0 0.0
    %139 = vmatpush1.msra.mxu0 0.0
    %140 = vmatprep.subr.mxu0 0.0
    %141 = vmatpush1.msra.mxu0 0.0
    %142 = vmatprep.subr.mxu0 0.0
    %143 = vmatpush1.msra.mxu0 0.0
    %144 = vmatprep.subr.mxu0 0.0
    %145 = vmatpush1.msra.mxu0 0.0
    %146 = vmatprep.subr.mxu0 0.0
    %147 = vmatpush1.msra.mxu0 0.0
    %148 = vmatprep.subr.mxu0 0.0
    %149 = vmatpush1.msra.mxu0 0.0
    %150 = vmatprep.subr.mxu0 0.0
    %151 = vmatpush1.msra.mxu0 0.0
    %152 = vmatprep.subr.mxu0 0.0
    %153 = vmatpush1.msra.mxu0 0.0
    %154 = vmatprep.subr.mxu0 0.0
    %155 = vmatpush1.msra.mxu0 0.0
    %156 = vmatprep.subr.mxu0 0.0
    %157 = vmatpush1.msra.mxu0 0.0
    %158 = vmatprep.subr.mxu0 0.0
    %159 = vmatpush1.msra.mxu0 %v33
    %160 = vmatprep.subr.mxu0 0.0
    %161 = vmatpush1.msra.mxu0 %v32
    %162 = vmatprep.subr.mxu0 0.0
    %163 = vmatpush1.msra.mxu0 %v31
    %164 = vmatprep.subr.mxu0 0.0
    %165 = vmatpush1.msra.mxu0 %v30
    %166 = vmatprep.subr.mxu0 0.0
    %167 = vmatpush2.msra.mxu0 0.0
    %168 = vmatprep.subr.mxu0 0.0
    %169 = vmatpush2.msra.mxu0 0.0
    %170 = vmatprep.subr.mxu0 0.0
    %171 = vmatpush2.msra.mxu0 0.0
    %172 = vmatprep.subr.mxu0 0.0
    %173 = vmatpush2.msra.mxu0 0.0
    %174 = vmatprep.subr.mxu0 0.0
    %175 = vmatpush2.msra.mxu0 0.0
    %176 = vmatprep.subr.mxu0 0.0
    %177 = vmatpush2.msra.mxu0 0.0
    %178 = vmatprep.subr.mxu0 0.0
    %179 = vmatpush2.msra.mxu0 0.0
    %180 = vmatprep.subr.mxu0 0.0
    %181 = vmatpush2.msra.mxu0 0.0
    %182 = vmatprep.subr.mxu0 0.0
    %183 = vmatpush2.msra.mxu0 0.0
    %184 = vmatprep.subr.mxu0 0.0
    %185 = vmatpush2.msra.mxu0 0.0
    %186 = vmatprep.subr.mxu0 0.0
    %187 = vmatpush2.msra.mxu0 0.0
    %188 = vmatprep.subr.mxu0 0.0
    %189 = vmatpush2.msra.mxu0 0.0
    %190 = vmatprep.subr.mxu0 0.0
    %191 = vmatpush2.msra.mxu0 0.0
    %192 = vmatprep.subr.mxu0 0.0
    %193 = vmatpush2.msra.mxu0 0.0
    %194 = vmatprep.subr.mxu0 0.0
    %195 = vmatpush2.msra.mxu0 0.0
    %196 = vmatprep.subr.mxu0 0.0
    %197 = vmatpush2.msra.mxu0 0.0
    %198 = vmatprep.mubr.f32.mxu0 0.0
    %199 = vmatmul.mubr.f32.gmra.mxu0 %v132
    %v200 = vpop.f32.mrf.mxu0
    %v201 = vadd.f32 0.0, %v200
    %v202 = vpop.f32.mrf.mxu0
    %203 = vdwg.mxu0
    %v204 = vadd.f32 %v127, %v201
    %v205 = vtanh.pop %v204
    %v207 = vsel %vm130, %v205, 0
    %209 = vmatprep.subr.mxu0 0.0
    %210 = vmatpush1.msra.mxu0 0.0
    %211 = vmatprep.subr.mxu0 0.0
    %212 = vmatpush1.msra.mxu0 0.0
    %213 = vmatprep.subr.mxu0 0.0
    %214 = vmatpush1.msra.mxu0 0.0
    %215 = vmatprep.subr.mxu0 0.0
    %216 = vmatpush1.msra.mxu0 0.0
    %217 = vmatprep.subr.mxu0 0.0
    %218 = vmatpush1.msra.mxu0 0.0
    %219 = vmatprep.subr.mxu0 0.0
    %220 = vmatpush1.msra.mxu0 0.0
    %221 = vmatprep.subr.mxu0 0.0
    %222 = vmatpush1.msra.mxu0 0.0
    %223 = vmatprep.subr.mxu0 0.0
    %224 = vmatpush1.msra.mxu0 0.0
    %225 = vmatprep.subr.mxu0 0.0
    %226 = vmatpush1.msra.mxu0 0.0
    %227 = vmatprep.subr.mxu0 0.0
    %228 = vmatpush1.msra.mxu0 0.0
    %229 = vmatprep.subr.mxu0 0.0
    %230 = vmatpush1.msra.mxu0 0.0
    %231 = vmatprep.subr.mxu0 0.0
    %232 = vmatpush1.msra.mxu0 0.0
    %233 = vmatprep.subr.mxu0 0.0
    %234 = vmatpush1.msra.mxu0 %v33
    %235 = vmatprep.subr.mxu0 0.0
    %236 = vmatpush1.msra.mxu0 %v32
    %237 = vmatprep.subr.mxu0 0.0
    %238 = vmatpush1.msra.mxu0 %v31
    %239 = vmatprep.subr.mxu0 0.0
    %240 = vmatpush1.msra.mxu0 %v30
    %241 = vmatprep.subr.mxu0 0.0
    %242 = vmatpush2.msra.mxu0 0.0
    %243 = vmatprep.subr.mxu0 0.0
    %244 = vmatpush2.msra.mxu0 0.0
    %245 = vmatprep.subr.mxu0 0.0
    %246 = vmatpush2.msra.mxu0 0.0
    %247 = vmatprep.subr.mxu0 0.0
    %248 = vmatpush2.msra.mxu0 0.0
    %249 = vmatprep.subr.mxu0 0.0
    %250 = vmatpush2.msra.mxu0 0.0
    %251 = vmatprep.subr.mxu0 0.0
    %252 = vmatpush2.msra.mxu0 0.0
    %253 = vmatprep.subr.mxu0 0.0
    %254 = vmatpush2.msra.mxu0 0.0
    %255 = vmatprep.subr.mxu0 0.0
    %256 = vmatpush2.msra.mxu0 0.0
    %257 = vmatprep.subr.mxu0 0.0
    %258 = vmatpush2.msra.mxu0 0.0
    %259 = vmatprep.subr.mxu0 0.0
    %260 = vmatpush2.msra.mxu0 0.0
    %261 = vmatprep.subr.mxu0 0.0
    %262 = vmatpush2.msra.mxu0 0.0
    %263 = vmatprep.subr.mxu0 0.0
    %264 = vmatpush2.msra.mxu0 0.0
    %265 = vmatprep.subr.mxu0 0.0
    %266 = vmatpush2.msra.mxu0 0.0
    %267 = vmatprep.subr.mxu0 0.0
    %268 = vmatpush2.msra.mxu0 0.0
    %269 = vmatprep.subr.mxu0 0.0
    %270 = vmatpush2.msra.mxu0 0.0
    %271 = vmatprep.subr.mxu0 0.0
    %272 = vmatpush2.msra.mxu0 0.0
    %273 = vmatprep.mubr.f32.mxu0 0.0
    %274 = vmatmul.mubr.f32.gmra.mxu0 %v207
    %v275 = vpop.f32.mrf.mxu0
    %v276 = vadd.f32 0.0, %v275
    %v277 = vpop.f32.mrf.mxu0
    %278 = vdwg.mxu0
    %v280 = vrot.slane %v276, 7
    %v282 = vadd.f32 %v127, %v280
    %v283 = vtanh.pop %v282
    %v285 = vrot.slane %v283, 1
    %v286 = vsel %vm130, %v285, 0
    %288 = vmatprep.subr.mxu0 0.0
    %289 = vmatpush1.msra.mxu0 0.0
    %290 = vmatprep.subr.mxu0 0.0
    %291 = vmatpush1.msra.mxu0 0.0
    %292 = vmatprep.subr.mxu0 0.0
    %293 = vmatpush1.msra.mxu0 0.0
    %294 = vmatprep.subr.mxu0 0.0
    %295 = vmatpush1.msra.mxu0 0.0
    %296 = vmatprep.subr.mxu0 0.0
    %297 = vmatpush1.msra.mxu0 0.0
    %298 = vmatprep.subr.mxu0 0.0
    %299 = vmatpush1.msra.mxu0 0.0
    %300 = vmatprep.subr.mxu0 0.0
    %301 = vmatpush1.msra.mxu0 0.0
    %302 = vmatprep.subr.mxu0 0.0
    %303 = vmatpush1.msra.mxu0 0.0
    %304 = vmatprep.subr.mxu0 0.0
    %305 = vmatpush1.msra.mxu0 0.0
    %306 = vmatprep.subr.mxu0 0.0
    %307 = vmatpush1.msra.mxu0 0.0
    %308 = vmatprep.subr.mxu0 0.0
    %309 = vmatpush1.msra.mxu0 0.0
    %310 = vmatprep.subr.mxu0 0.0
    %311 = vmatpush1.msra.mxu0 0.0
    %312 = vmatprep.subr.mxu0 0.0
    %313 = vmatpush1.msra.mxu0 %v33
    %314 = vmatprep.subr.mxu0 0.0
    %315 = vmatpush1.msra.mxu0 %v32
    %316 = vmatprep.subr.mxu0 0.0
    %317 = vmatpush1.msra.mxu0 %v31
    %318 = vmatprep.subr.mxu0 0.0
    %319 = vmatpush1.msra.mxu0 %v30
    %320 = vmatprep.subr.mxu0 0.0
    %321 = vmatpush2.msra.mxu0 0.0
    %322 = vmatprep.subr.mxu0 0.0
    %323 = vmatpush2.msra.mxu0 0.0
    %324 = vmatprep.subr.mxu0 0.0
    %325 = vmatpush2.msra.mxu0 0.0
    %326 = vmatprep.subr.mxu0 0.0
    %327 = vmatpush2.msra.mxu0 0.0
    %328 = vmatprep.subr.mxu0 0.0
    %329 = vmatpush2.msra.mxu0 0.0
    %330 = vmatprep.subr.mxu0 0.0
    %331 = vmatpush2.msra.mxu0 0.0
    %332 = vmatprep.subr.mxu0 0.0
    %333 = vmatpush2.msra.mxu0 0.0
    %334 = vmatprep.subr.mxu0 0.0
    %335 = vmatpush2.msra.mxu0 0.0
    %336 = vmatprep.subr.mxu0 0.0
    %337 = vmatpush2.msra.mxu0 0.0
    %338 = vmatprep.subr.mxu0 0.0
    %339 = vmatpush2.msra.mxu0 0.0
    %340 = vmatprep.subr.mxu0 0.0
    %341 = vmatpush2.msra.mxu0 0.0
    %342 = vmatprep.subr.mxu0 0.0
    %343 = vmatpush2.msra.mxu0 0.0
    %344 = vmatprep.subr.mxu0 0.0
    %345 = vmatpush2.msra.mxu0 0.0
    %346 = vmatprep.subr.mxu0 0.0
    %347 = vmatpush2.msra.mxu0 0.0
    %348 = vmatprep.subr.mxu0 0.0
    %349 = vmatpush2.msra.mxu0 0.0
    %350 = vmatprep.subr.mxu0 0.0
    %351 = vmatpush2.msra.mxu0 0.0
    %352 = vmatprep.mubr.f32.mxu0 0.0
    %353 = vmatmul.mubr.f32.gmra.mxu0 %v286
    %v354 = vpop.f32.mrf.mxu0
    %v355 = vadd.f32 0.0, %v354
    %v356 = vpop.f32.mrf.mxu0
    %357 = vdwg.mxu0
    %v359 = vrot.slane %v355, 6
    %v361 = vadd.f32 %v127, %v359
    %v362 = vtanh.pop %v361
    %v364 = vrot.slane %v362, 2
    %v365 = vsel %vm130, %v364, 0
    %367 = vmatprep.subr.mxu0 0.0
    %368 = vmatpush1.msra.mxu0 0.0
    %369 = vmatprep.subr.mxu0 0.0
    %370 = vmatpush1.msra.mxu0 0.0
    %371 = vmatprep.subr.mxu0 0.0
    %372 = vmatpush1.msra.mxu0 0.0
    %373 = vmatprep.subr.mxu0 0.0
    %374 = vmatpush1.msra.mxu0 0.0
    %375 = vmatprep.subr.mxu0 0.0
    %376 = vmatpush1.msra.mxu0 0.0
    %377 = vmatprep.subr.mxu0 0.0
    %378 = vmatpush1.msra.mxu0 0.0
    %379 = vmatprep.subr.mxu0 0.0
    %380 = vmatpush1.msra.mxu0 0.0
    %381 = vmatprep.subr.mxu0 0.0
    %382 = vmatpush1.msra.mxu0 0.0
    %383 = vmatprep.subr.mxu0 0.0
    %384 = vmatpush1.msra.mxu0 0.0
    %385 = vmatprep.subr.mxu0 0.0
    %386 = vmatpush1.msra.mxu0 0.0
    %387 = vmatprep.subr.mxu0 0.0
    %388 = vmatpush1.msra.mxu0 0.0
    %389 = vmatprep.subr.mxu0 0.0
    %390 = vmatpush1.msra.mxu0 0.0
    %391 = vmatprep.subr.mxu0 0.0
    %392 = vmatpush1.msra.mxu0 %v33
    %393 = vmatprep.subr.mxu0 0.0
    %394 = vmatpush1.msra.mxu0 %v32
    %395 = vmatprep.subr.mxu0 0.0
    %396 = vmatpush1.msra.mxu0 %v31
    %397 = vmatprep.subr.mxu0 0.0
    %398 = vmatpush1.msra.mxu0 %v30
    %399 = vmatprep.subr.mxu0 0.0
    %400 = vmatpush2.msra.mxu0 0.0
    %401 = vmatprep.subr.mxu0 0.0
    %402 = vmatpush2.msra.mxu0 0.0
    %403 = vmatprep.subr.mxu0 0.0
    %404 = vmatpush2.msra.mxu0 0.0
    %405 = vmatprep.subr.mxu0 0.0
    %406 = vmatpush2.msra.mxu0 0.0
    %407 = vmatprep.subr.mxu0 0.0
    %408 = vmatpush2.msra.mxu0 0.0
    %409 = vmatprep.subr.mxu0 0.0
    %410 = vmatpush2.msra.mxu0 0.0
    %411 = vmatprep.subr.mxu0 0.0
    %412 = vmatpush2.msra.mxu0 0.0
    %413 = vmatprep.subr.mxu0 0.0
    %414 = vmatpush2.msra.mxu0 0.0
    %415 = vmatprep.subr.mxu0 0.0
    %416 = vmatpush2.msra.mxu0 0.0
    %417 = vmatprep.subr.mxu0 0.0
    %418 = vmatpush2.msra.mxu0 0.0
    %419 = vmatprep.subr.mxu0 0.0
    %420 = vmatpush2.msra.mxu0 0.0
    %421 = vmatprep.subr.mxu0 0.0
    %422 = vmatpush2.msra.mxu0 0.0
    %423 = vmatprep.subr.mxu0 0.0
    %424 = vmatpush2.msra.mxu0 0.0
    %425 = vmatprep.subr.mxu0 0.0
    %426 = vmatpush2.msra.mxu0 0.0
    %427 = vmatprep.subr.mxu0 0.0
    %428 = vmatpush2.msra.mxu0 0.0
    %429 = vmatprep.subr.mxu0 0.0
    %430 = vmatpush2.msra.mxu0 0.0
    %431 = vmatprep.mubr.f32.mxu0 0.0
    %432 = vmatmul.mubr.f32.gmra.mxu0 %v365
    %v433 = vpop.f32.mrf.mxu0
    %v434 = vadd.f32 0.0, %v433
    %v435 = vpop.f32.mrf.mxu0
    %436 = vdwg.mxu0
    %v438 = vrot.slane %v434, 5
    %v440 = vadd.f32 %v127, %v438
    %v441 = vtanh.pop %v440
    %v443 = vrot.slane %v441, 3
    %v444 = vsel %vm130, %v443, 0
    %446 = vmatprep.subr.mxu0 0.0
    %447 = vmatpush1.msra.mxu0 0.0
    %448 = vmatprep.subr.mxu0 0.0
    %449 = vmatpush1.msra.mxu0 0.0
    %450 = vmatprep.subr.mxu0 0.0
    %451 = vmatpush1.msra.mxu0 0.0
    %452 = vmatprep.subr.mxu0 0.0
    %453 = vmatpush1.msra.mxu0 0.0
    %454 = vmatprep.subr.mxu0 0.0
    %455 = vmatpush1.msra.mxu0 0.0
    %456 = vmatprep.subr.mxu0 0.0
    %457 = vmatpush1.msra.mxu0 0.0
    %458 = vmatprep.subr.mxu0 0.0
    %459 = vmatpush1.msra.mxu0 0.0
    %460 = vmatprep.subr.mxu0 0.0
    %461 = vmatpush1.msra.mxu0 0.0
    %462 = vmatprep.subr.mxu0 0.0
    %463 = vmatpush1.msra.mxu0 0.0
    %464 = vmatprep.subr.mxu0 0.0
    %465 = vmatpush1.msra.mxu0 0.0
    %466 = vmatprep.subr.mxu0 0.0
    %467 = vmatpush1.msra.mxu0 0.0
    %468 = vmatprep.subr.mxu0 0.0
    %469 = vmatpush1.msra.mxu0 0.0
    %470 = vmatprep.subr.mxu0 0.0
    %471 = vmatpush1.msra.mxu0 %v33
    %472 = vmatprep.subr.mxu0 0.0
    %473 = vmatpush1.msra.mxu0 %v32
    %474 = vmatprep.subr.mxu0 0.0
    %475 = vmatpush1.msra.mxu0 %v31
    %476 = vmatprep.subr.mxu0 0.0
    %477 = vmatpush1.msra.mxu0 %v30
    %478 = vmatprep.subr.mxu0 0.0
    %479 = vmatpush2.msra.mxu0 0.0
    %480 = vmatprep.subr.mxu0 0.0
    %481 = vmatpush2.msra.mxu0 0.0
    %482 = vmatprep.subr.mxu0 0.0
    %483 = vmatpush2.msra.mxu0 0.0
    %484 = vmatprep.subr.mxu0 0.0
    %485 = vmatpush2.msra.mxu0 0.0
    %486 = vmatprep.subr.mxu0 0.0
    %487 = vmatpush2.msra.mxu0 0.0
    %488 = vmatprep.subr.mxu0 0.0
    %489 = vmatpush2.msra.mxu0 0.0
    %490 = vmatprep.subr.mxu0 0.0
    %491 = vmatpush2.msra.mxu0 0.0
    %492 = vmatprep.subr.mxu0 0.0
    %493 = vmatpush2.msra.mxu0 0.0
    %494 = vmatprep.subr.mxu0 0.0
    %495 = vmatpush2.msra.mxu0 0.0
    %496 = vmatprep.subr.mxu0 0.0
    %497 = vmatpush2.msra.mxu0 0.0
    %498 = vmatprep.subr.mxu0 0.0
    %499 = vmatpush2.msra.mxu0 0.0
    %500 = vmatprep.subr.mxu0 0.0
    %501 = vmatpush2.msra.mxu0 0.0
    %502 = vmatprep.subr.mxu0 0.0
    %503 = vmatpush2.msra.mxu0 0.0
    %504 = vmatprep.subr.mxu0 0.0
    %505 = vmatpush2.msra.mxu0 0.0
    %506 = vmatprep.subr.mxu0 0.0
    %507 = vmatpush2.msra.mxu0 0.0
    %508 = vmatprep.subr.mxu0 0.0
    %509 = vmatpush2.msra.mxu0 0.0
    %510 = vmatprep.mubr.f32.mxu0 0.0
    %511 = vmatmul.mubr.f32.gmra.mxu0 %v444
    %v512 = vpop.f32.mrf.mxu0
    %v513 = vadd.f32 0.0, %v512
    %v514 = vpop.f32.mrf.mxu0
    %515 = vdwg.mxu0
    %v517 = vrot.slane %v513, 4
    %v519 = vadd.f32 %v127, %v517
    %v520 = vtanh.pop %v519
    %v522 = vrot.slane %v520, 4
    %v523 = vsel %vm130, %v522, 0
    %525 = vmatprep.subr.mxu0 0.0
    %526 = vmatpush1.msra.mxu0 0.0
    %527 = vmatprep.subr.mxu0 0.0
    %528 = vmatpush1.msra.mxu0 0.0
    %529 = vmatprep.subr.mxu0 0.0
    %530 = vmatpush1.msra.mxu0 0.0
    %531 = vmatprep.subr.mxu0 0.0
    %532 = vmatpush1.msra.mxu0 0.0
    %533 = vmatprep.subr.mxu0 0.0
    %534 = vmatpush1.msra.mxu0 0.0
    %535 = vmatprep.subr.mxu0 0.0
    %536 = vmatpush1.msra.mxu0 0.0
    %537 = vmatprep.subr.mxu0 0.0
    %538 = vmatpush1.msra.mxu0 0.0
    %539 = vmatprep.subr.mxu0 0.0
    %540 = vmatpush1.msra.mxu0 0.0
    %541 = vmatprep.subr.mxu0 0.0
    %542 = vmatpush1.msra.mxu0 0.0
    %543 = vmatprep.subr.mxu0 0.0
    %544 = vmatpush1.msra.mxu0 0.0
    %545 = vmatprep.subr.mxu0 0.0
    %546 = vmatpush1.msra.mxu0 0.0
    %547 = vmatprep.subr.mxu0 0.0
    %548 = vmatpush1.msra.mxu0 0.0
    %549 = vmatprep.subr.mxu0 0.0
    %550 = vmatpush1.msra.mxu0 %v33
    %551 = vmatprep.subr.mxu0 0.0
    %552 = vmatpush1.msra.mxu0 %v32
    %553 = vmatprep.subr.mxu0 0.0
    %554 = vmatpush1.msra.mxu0 %v31
    %555 = vmatprep.subr.mxu0 0.0
    %556 = vmatpush1.msra.mxu0 %v30
    %557 = vmatprep.subr.mxu0 0.0
    %558 = vmatpush2.msra.mxu0 0.0
    %559 = vmatprep.subr.mxu0 0.0
    %560 = vmatpush2.msra.mxu0 0.0
    %561 = vmatprep.subr.mxu0 0.0
    %562 = vmatpush2.msra.mxu0 0.0
    %563 = vmatprep.subr.mxu0 0.0
    %564 = vmatpush2.msra.mxu0 0.0
    %565 = vmatprep.subr.mxu0 0.0
    %566 = vmatpush2.msra.mxu0 0.0
    %567 = vmatprep.subr.mxu0 0.0
    %568 = vmatpush2.msra.mxu0 0.0
    %569 = vmatprep.subr.mxu0 0.0
    %570 = vmatpush2.msra.mxu0 0.0
    %571 = vmatprep.subr.mxu0 0.0
    %572 = vmatpush2.msra.mxu0 0.0
    %573 = vmatprep.subr.mxu0 0.0
    %574 = vmatpush2.msra.mxu0 0.0
    %575 = vmatprep.subr.mxu0 0.0
    %576 = vmatpush2.msra.mxu0 0.0
    %577 = vmatprep.subr.mxu0 0.0
    %578 = vmatpush2.msra.mxu0 0.0
    %579 = vmatprep.subr.mxu0 0.0
    %580 = vmatpush2.msra.mxu0 0.0
    %581 = vmatprep.subr.mxu0 0.0
    %582 = vmatpush2.msra.mxu0 0.0
    %583 = vmatprep.subr.mxu0 0.0
    %584 = vmatpush2.msra.mxu0 0.0
    %585 = vmatprep.subr.mxu0 0.0
    %586 = vmatpush2.msra.mxu0 0.0
    %587 = vmatprep.subr.mxu0 0.0
    %588 = vmatpush2.msra.mxu0 0.0
    %589 = vmatprep.mubr.f32.mxu0 0.0
    %590 = vmatmul.mubr.f32.gmra.mxu0 %v523
    %v591 = vpop.f32.mrf.mxu0
    %v592 = vadd.f32 0.0, %v591
    %v593 = vpop.f32.mrf.mxu0
    %594 = vdwg.mxu0
    %v596 = vrot.slane %v592, 3
    %v598 = vadd.f32 %v127, %v596
    %v599 = vtanh.pop %v598
    %v601 = vrot.slane %v599, 5
    %v602 = vsel %vm130, %v601, 0
    %604 = vmatprep.subr.mxu0 0.0
    %605 = vmatpush1.msra.mxu0 0.0
    %606 = vmatprep.subr.mxu0 0.0
    %607 = vmatpush1.msra.mxu0 0.0
    %608 = vmatprep.subr.mxu0 0.0
    %609 = vmatpush1.msra.mxu0 0.0
    %610 = vmatprep.subr.mxu0 0.0
    %611 = vmatpush1.msra.mxu0 0.0
    %612 = vmatprep.subr.mxu0 0.0
    %613 = vmatpush1.msra.mxu0 0.0
    %614 = vmatprep.subr.mxu0 0.0
    %615 = vmatpush1.msra.mxu0 0.0
    %616 = vmatprep.subr.mxu0 0.0
    %617 = vmatpush1.msra.mxu0 0.0
    %618 = vmatprep.subr.mxu0 0.0
    %619 = vmatpush1.msra.mxu0 0.0
    %620 = vmatprep.subr.mxu0 0.0
    %621 = vmatpush1.msra.mxu0 0.0
    %622 = vmatprep.subr.mxu0 0.0
    %623 = vmatpush1.msra.mxu0 0.0
    %624 = vmatprep.subr.mxu0 0.0
    %625 = vmatpush1.msra.mxu0 0.0
    %626 = vmatprep.subr.mxu0 0.0
    %627 = vmatpush1.msra.mxu0 0.0
    %628 = vmatprep.subr.mxu0 0.0
    %629 = vmatpush1.msra.mxu0 %v33
    %630 = vmatprep.subr.mxu0 0.0
    %631 = vmatpush1.msra.mxu0 %v32
    %632 = vmatprep.subr.mxu0 0.0
    %633 = vmatpush1.msra.mxu0 %v31
    %634 = vmatprep.subr.mxu0 0.0
    %635 = vmatpush1.msra.mxu0 %v30
    %636 = vmatprep.subr.mxu0 0.0
    %637 = vmatpush2.msra.mxu0 0.0
    %638 = vmatprep.subr.mxu0 0.0
    %639 = vmatpush2.msra.mxu0 0.0
    %640 = vmatprep.subr.mxu0 0.0
    %641 = vmatpush2.msra.mxu0 0.0
    %642 = vmatprep.subr.mxu0 0.0
    %643 = vmatpush2.msra.mxu0 0.0
    %644 = vmatprep.subr.mxu0 0.0
    %645 = vmatpush2.msra.mxu0 0.0
    %646 = vmatprep.subr.mxu0 0.0
    %647 = vmatpush2.msra.mxu0 0.0
    %648 = vmatprep.subr.mxu0 0.0
    %649 = vmatpush2.msra.mxu0 0.0
    %650 = vmatprep.subr.mxu0 0.0
    %651 = vmatpush2.msra.mxu0 0.0
    %652 = vmatprep.subr.mxu0 0.0
    %653 = vmatpush2.msra.mxu0 0.0
    %654 = vmatprep.subr.mxu0 0.0
    %655 = vmatpush2.msra.mxu0 0.0
    %656 = vmatprep.subr.mxu0 0.0
    %657 = vmatpush2.msra.mxu0 0.0
    %658 = vmatprep.subr.mxu0 0.0
    %659 = vmatpush2.msra.mxu0 0.0
    %660 = vmatprep.subr.mxu0 0.0
    %661 = vmatpush2.msra.mxu0 0.0
    %662 = vmatprep.subr.mxu0 0.0
    %663 = vmatpush2.msra.mxu0 0.0
    %664 = vmatprep.subr.mxu0 0.0
    %665 = vmatpush2.msra.mxu0 0.0
    %666 = vmatprep.subr.mxu0 0.0
    %667 = vmatpush2.msra.mxu0 0.0
    %668 = vmatprep.mubr.f32.mxu0 0.0
    %669 = vmatmul.mubr.f32.gmra.mxu0 %v602
    %v670 = vpop.f32.mrf.mxu0
    %v671 = vadd.f32 0.0, %v670
    %v672 = vpop.f32.mrf.mxu0
    %673 = vdwg.mxu0
    %v675 = vrot.slane %v671, 2
    %v677 = vadd.f32 %v127, %v675
    %v678 = vtanh.pop %v677
    %v680 = vrot.slane %v678, 6
    %v681 = vsel %vm130, %v680, 0
    %683 = vmatprep.subr.mxu0 0.0
    %684 = vmatpush1.msra.mxu0 0.0
    %685 = vmatprep.subr.mxu0 0.0
    %686 = vmatpush1.msra.mxu0 0.0
    %687 = vmatprep.subr.mxu0 0.0
    %688 = vmatpush1.msra.mxu0 0.0
    %689 = vmatprep.subr.mxu0 0.0
    %690 = vmatpush1.msra.mxu0 0.0
    %691 = vmatprep.subr.mxu0 0.0
    %692 = vmatpush1.msra.mxu0 0.0
    %693 = vmatprep.subr.mxu0 0.0
    %694 = vmatpush1.msra.mxu0 0.0
    %695 = vmatprep.subr.mxu0 0.0
    %696 = vmatpush1.msra.mxu0 0.0
    %697 = vmatprep.subr.mxu0 0.0
    %698 = vmatpush1.msra.mxu0 0.0
    %699 = vmatprep.subr.mxu0 0.0
    %700 = vmatpush1.msra.mxu0 0.0
    %701 = vmatprep.subr.mxu0 0.0
    %702 = vmatpush1.msra.mxu0 0.0
    %703 = vmatprep.subr.mxu0 0.0
    %704 = vmatpush1.msra.mxu0 0.0
    %705 = vmatprep.subr.mxu0 0.0
    %706 = vmatpush1.msra.mxu0 0.0
    %707 = vmatprep.subr.mxu0 0.0
    %708 = vmatpush1.msra.mxu0 %v33
    %709 = vmatprep.subr.mxu0 0.0
    %710 = vmatpush1.msra.mxu0 %v32
    %711 = vmatprep.subr.mxu0 0.0
    %712 = vmatpush1.msra.mxu0 %v31
    %713 = vmatprep.subr.mxu0 0.0
    %714 = vmatpush1.msra.mxu0 %v30
    %715 = vmatprep.subr.mxu0 0.0
    %716 = vmatpush2.msra.mxu0 0.0
    %717 = vmatprep.subr.mxu0 0.0
    %718 = vmatpush2.msra.mxu0 0.0
    %719 = vmatprep.subr.mxu0 0.0
    %720 = vmatpush2.msra.mxu0 0.0
    %721 = vmatprep.subr.mxu0 0.0
    %722 = vmatpush2.msra.mxu0 0.0
    %723 = vmatprep.subr.mxu0 0.0
    %724 = vmatpush2.msra.mxu0 0.0
    %725 = vmatprep.subr.mxu0 0.0
    %726 = vmatpush2.msra.mxu0 0.0
    %727 = vmatprep.subr.mxu0 0.0
    %728 = vmatpush2.msra.mxu0 0.0
    %729 = vmatprep.subr.mxu0 0.0
    %730 = vmatpush2.msra.mxu0 0.0
    %731 = vmatprep.subr.mxu0 0.0
    %732 = vmatpush2.msra.mxu0 0.0
    %733 = vmatprep.subr.mxu0 0.0
    %734 = vmatpush2.msra.mxu0 0.0
    %735 = vmatprep.subr.mxu0 0.0
    %736 = vmatpush2.msra.mxu0 0.0
    %737 = vmatprep.subr.mxu0 0.0
    %738 = vmatpush2.msra.mxu0 0.0
    %739 = vmatprep.subr.mxu0 0.0
    %740 = vmatpush2.msra.mxu0 0.0
    %741 = vmatprep.subr.mxu0 0.0
    %742 = vmatpush2.msra.mxu0 0.0
    %743 = vmatprep.subr.mxu0 0.0
    %744 = vmatpush2.msra.mxu0 0.0
    %745 = vmatprep.subr.mxu0 0.0
    %746 = vmatpush2.msra.mxu0 0.0
    %747 = vmatprep.mubr.f32.mxu0 0.0
    %748 = vmatmul.mubr.f32.gmra.mxu0 %v681
    %v749 = vpop.f32.mrf.mxu0
    %v750 = vadd.f32 0.0, %v749
    %v751 = vpop.f32.mrf.mxu0
    %752 = vdwg.mxu0
    %v754 = vrot.slane %v750, 1
    %v756 = vadd.f32 %v127, %v754
    %v757 = vtanh.pop %v756
    %vm758 = vcmask 1040384
    %v759 = vsel %vm758, %v205, %v283
    %vm760 = vcmask 1041408
    %v761 = vsel %vm760, %v759, %v362
    %vm762 = vcmask 1042432
    %v763 = vsel %vm762, %v761, %v441
    %vm764 = vcmask 1043456
    %v765 = vsel %vm764, %v763, %v520
    %vm766 = vcmask 1044480
    %v767 = vsel %vm766, %v765, %v599
    %vm768 = vcmask 1045504
    %v769 = vsel %vm768, %v767, %v678
    %vm770 = vcmask 1046528
    %v771 = vsel %vm770, %v769, %v757
    %v773 = vrot.slane %v757, 7
    %v774 = vsel %vm130, %v773, 0
    %776 = vmatprep.subr.mxu0 0.0
    %777 = vmatpush1.msra.mxu0 0.0
    %778 = vmatprep.subr.mxu0 0.0
    %779 = vmatpush1.msra.mxu0 0.0
    %780 = vmatprep.subr.mxu0 0.0
    %781 = vmatpush1.msra.mxu0 0.0
    %782 = vmatprep.subr.mxu0 0.0
    %783 = vmatpush1.msra.mxu0 0.0
    %784 = vmatprep.subr.mxu0 0.0
    %785 = vmatpush1.msra.mxu0 0.0
    %786 = vmatprep.subr.mxu0 0.0
    %787 = vmatpush1.msra.mxu0 0.0
    %788 = vmatprep.subr.mxu0 0.0
    %789 = vmatpush1.msra.mxu0 0.0
    %790 = vmatprep.subr.mxu0 0.0
    %791 = vmatpush1.msra.mxu0 0.0
    %792 = vmatprep.subr.mxu0 0.0
    %793 = vmatpush1.msra.mxu0 0.0
    %794 = vmatprep.subr.mxu0 0.0
    %795 = vmatpush1.msra.mxu0 0.0
    %796 = vmatprep.subr.mxu0 0.0
    %797 = vmatpush1.msra.mxu0 0.0
    %798 = vmatprep.subr.mxu0 0.0
    %799 = vmatpush1.msra.mxu0 0.0
    %800 = vmatprep.subr.mxu0 0.0
    %801 = vmatpush1.msra.mxu0 %v39
    %802 = vmatprep.subr.mxu0 0.0
    %803 = vmatpush1.msra.mxu0 %v38
    %804 = vmatprep.subr.mxu0 0.0
    %805 = vmatpush1.msra.mxu0 %v37
    %806 = vmatprep.subr.mxu0 0.0
    %807 = vmatpush1.msra.mxu0 %v36
    %808 = vmatprep.subr.mxu0 0.0
    %809 = vmatpush2.msra.mxu0 0.0
    %810 = vmatprep.subr.mxu0 0.0
    %811 = vmatpush2.msra.mxu0 0.0
    %812 = vmatprep.subr.mxu0 0.0
    %813 = vmatpush2.msra.mxu0 0.0
    %814 = vmatprep.subr.mxu0 0.0
    %815 = vmatpush2.msra.mxu0 0.0
    %816 = vmatprep.subr.mxu0 0.0
    %817 = vmatpush2.msra.mxu0 0.0
    %818 = vmatprep.subr.mxu0 0.0
    %819 = vmatpush2.msra.mxu0 0.0
    %820 = vmatprep.subr.mxu0 0.0
    %821 = vmatpush2.msra.mxu0 0.0
    %822 = vmatprep.subr.mxu0 0.0
    %823 = vmatpush2.msra.mxu0 0.0
    %824 = vmatprep.subr.mxu0 0.0
    %825 = vmatpush2.msra.mxu0 0.0
    %826 = vmatprep.subr.mxu0 0.0
    %827 = vmatpush2.msra.mxu0 0.0
    %828 = vmatprep.subr.mxu0 0.0
    %829 = vmatpush2.msra.mxu0 0.0
    %830 = vmatprep.subr.mxu0 0.0
    %831 = vmatpush2.msra.mxu0 0.0
    %832 = vmatprep.subr.mxu0 0.0
    %833 = vmatpush2.msra.mxu0 0.0
    %834 = vmatprep.subr.mxu0 0.0
    %835 = vmatpush2.msra.mxu0 0.0
    %836 = vmatprep.subr.mxu0 0.0
    %837 = vmatpush2.msra.mxu0 0.0
    %838 = vmatprep.subr.mxu0 0.0
    %839 = vmatpush2.msra.mxu0 0.0
    %840 = vmatprep.mubr.f32.mxu0 0.0
    %841 = vmatmul.mubr.f32.gmra.mxu0 %v774
    %v842 = vpop.f32.mrf.mxu0
    %v843 = vadd.f32 0.0, %v842
    %v844 = vpop.f32.mrf.mxu0
    %845 = vdwg.mxu0
    %v846 = vlaneseq
    %v847 = vshrl.u32 %v846, 7
    %v848 = vsub.s32 0, %v847
    %v849 = vrot.slane %v843, %v848
    %v851 = vsel %vm56, %v26, 0
    %853 = vmatprep.subr.mxu0 0.0
    %854 = vmatpush1.msra.mxu0 0.0
    %855 = vmatprep.subr.mxu0 0.0
    %856 = vmatpush1.msra.mxu0 0.0
    %857 = vmatprep.subr.mxu0 0.0
    %858 = vmatpush1.msra.mxu0 0.0
    %859 = vmatprep.subr.mxu0 0.0
    %860 = vmatpush1.msra.mxu0 0.0
    %861 = vmatprep.subr.mxu0 0.0
    %862 = vmatpush1.msra.mxu0 0.0
    %863 = vmatprep.subr.mxu0 0.0
    %864 = vmatpush1.msra.mxu0 0.0
    %865 = vmatprep.subr.mxu0 0.0
    %866 = vmatpush1.msra.mxu0 0.0
    %867 = vmatprep.subr.mxu0 0.0
    %868 = vmatpush1.msra.mxu0 0.0
    %869 = vmatprep.subr.mxu0 0.0
    %870 = vmatpush1.msra.mxu0 0.0
    %871 = vmatprep.subr.mxu0 0.0
    %872 = vmatpush1.msra.mxu0 0.0
    %873 = vmatprep.subr.mxu0 0.0
    %874 = vmatpush1.msra.mxu0 0.0
    %875 = vmatprep.subr.mxu0 0.0
    %876 = vmatpush1.msra.mxu0 0.0
    %877 = vmatprep.subr.mxu0 0.0
    %878 = vmatpush1.msra.mxu0 0.0
    %879 = vmatprep.subr.mxu0 0.0
    %880 = vmatpush1.msra.mxu0 0.0
    %881 = vmatprep.subr.mxu0 0.0
    %882 = vmatpush1.msra.mxu0 %v35
    %883 = vmatprep.subr.mxu0 0.0
    %884 = vmatpush1.msra.mxu0 %v34
    %885 = vmatprep.subr.mxu0 0.0
    %886 = vmatpush2.msra.mxu0 0.0
    %887 = vmatprep.subr.mxu0 0.0
    %888 = vmatpush2.msra.mxu0 0.0
    %889 = vmatprep.subr.mxu0 0.0
    %890 = vmatpush2.msra.mxu0 0.0
    %891 = vmatprep.subr.mxu0 0.0
    %892 = vmatpush2.msra.mxu0 0.0
    %893 = vmatprep.subr.mxu0 0.0
    %894 = vmatpush2.msra.mxu0 0.0
    %895 = vmatprep.subr.mxu0 0.0
    %896 = vmatpush2.msra.mxu0 0.0
    %897 = vmatprep.subr.mxu0 0.0
    %898 = vmatpush2.msra.mxu0 0.0
    %899 = vmatprep.subr.mxu0 0.0
    %900 = vmatpush2.msra.mxu0 0.0
    %901 = vmatprep.subr.mxu0 0.0
    %902 = vmatpush2.msra.mxu0 0.0
    %903 = vmatprep.subr.mxu0 0.0
    %904 = vmatpush2.msra.mxu0 0.0
    %905 = vmatprep.subr.mxu0 0.0
    %906 = vmatpush2.msra.mxu0 0.0
    %907 = vmatprep.subr.mxu0 0.0
    %908 = vmatpush2.msra.mxu0 0.0
    %909 = vmatprep.subr.mxu0 0.0
    %910 = vmatpush2.msra.mxu0 0.0
    %911 = vmatprep.subr.mxu0 0.0
    %912 = vmatpush2.msra.mxu0 0.0
    %913 = vmatprep.subr.mxu0 0.0
    %914 = vmatpush2.msra.mxu0 0.0
    %915 = vmatprep.subr.mxu0 0.0
    %916 = vmatpush2.msra.mxu0 0.0
    %917 = vmatprep.mubr.f32.mxu0 0.0
    %918 = vmatmul.mubr.f32.gmra.mxu0 %v851
    %v919 = vpop.f32.mrf.mxu0
    %v920 = vadd.f32 %v849, %v919
    %v921 = vpop.f32.mrf.mxu0
    %922 = vdwg.mxu0
    %v923 = vlaneseq
    %v924 = vshrl.u32 %v923, 7
    %v925 = vsub.s32 0, %v924
    %v926 = vrot.slane %v49, %v925
    %v927 = vadd.f32 %v920, %v926
    %v928 = vtanh.pop %v927
    %v929 = vlaneseq
    %v930 = vshrl.u32 %v929, 7
    %v931 = vsub.s32 0, %v930
    %v932 = vrot.slane %v50, %v931
    %v934 = vsel %vm130, %v771, 0
    %936 = vmatprep.subr.mxu0 0.0
    %937 = vmatpush1.msra.mxu0 0.0
    %938 = vmatprep.subr.mxu0 0.0
    %939 = vmatpush1.msra.mxu0 0.0
    %940 = vmatprep.subr.mxu0 0.0
    %941 = vmatpush1.msra.mxu0 0.0
    %942 = vmatprep.subr.mxu0 0.0
    %943 = vmatpush1.msra.mxu0 0.0
    %944 = vmatprep.subr.mxu0 0.0
    %945 = vmatpush1.msra.mxu0 0.0
    %946 = vmatprep.subr.mxu0 0.0
    %947 = vmatpush1.msra.mxu0 0.0
    %948 = vmatprep.subr.mxu0 0.0
    %949 = vmatpush1.msra.mxu0 0.0
    %950 = vmatprep.subr.mxu0 0.0
    %951 = vmatpush1.msra.mxu0 0.0
    %952 = vmatprep.subr.mxu0 0.0
    %953 = vmatpush1.msra.mxu0 0.0
    %954 = vmatprep.subr.mxu0 0.0
    %955 = vmatpush1.msra.mxu0 0.0
    %956 = vmatprep.subr.mxu0 0.0
    %957 = vmatpush1.msra.mxu0 0.0
    %958 = vmatprep.subr.mxu0 0.0
    %959 = vmatpush1.msra.mxu0 0.0
    %960 = vmatprep.subr.mxu0 0.0
    %961 = vmatpush1.msra.mxu0 %v43
    %962 = vmatprep.subr.mxu0 0.0
    %963 = vmatpush1.msra.mxu0 %v42
    %964 = vmatprep.subr.mxu0 0.0
    %965 = vmatpush1.msra.mxu0 %v41
    %966 = vmatprep.subr.mxu0 0.0
    %967 = vmatpush1.msra.mxu0 %v40
    %968 = vmatprep.subr.mxu0 0.0
    %969 = vmatpush2.msra.mxu0 0.0
    %970 = vmatprep.subr.mxu0 0.0
    %971 = vmatpush2.msra.mxu0 0.0
    %972 = vmatprep.subr.mxu0 0.0
    %973 = vmatpush2.msra.mxu0 0.0
    %974 = vmatprep.subr.mxu0 0.0
    %975 = vmatpush2.msra.mxu0 0.0
    %976 = vmatprep.subr.mxu0 0.0
    %977 = vmatpush2.msra.mxu0 0.0
    %978 = vmatprep.subr.mxu0 0.0
    %979 = vmatpush2.msra.mxu0 0.0
    %980 = vmatprep.subr.mxu0 0.0
    %981 = vmatpush2.msra.mxu0 0.0
    %982 = vmatprep.subr.mxu0 0.0
    %983 = vmatpush2.msra.mxu0 0.0
    %984 = vmatprep.subr.mxu0 0.0
    %985 = vmatpush2.msra.mxu0 0.0
    %986 = vmatprep.subr.mxu0 0.0
    %987 = vmatpush2.msra.mxu0 0.0
    %988 = vmatprep.subr.mxu0 0.0
    %989 = vmatpush2.msra.mxu0 0.0
    %990 = vmatprep.subr.mxu0 0.0
    %991 = vmatpush2.msra.mxu0 0.0
    %992 = vmatprep.subr.mxu0 0.0
    %993 = vmatpush2.msra.mxu0 0.0
    %994 = vmatprep.subr.mxu0 0.0
    %995 = vmatpush2.msra.mxu0 0.0
    %996 = vmatprep.subr.mxu0 0.0
    %997 = vmatpush2.msra.mxu0 0.0
    %998 = vmatprep.subr.mxu0 0.0
    %999 = vmatpush2.msra.mxu0 0.0
    %1000 = vmatprep.mubr.f32.mxu0 0.0
    %1001 = vmatmul.mubr.f32.gmra.mxu0 %v934
    %v1002 = vpop.f32.mrf.mxu0
    %v1003 = vadd.f32 %v932, %v1002
    %v1004 = vpop.f32.mrf.mxu0
    %1005 = vdwg.mxu0
    %v1007 = vsel %vm130, %v928, 0
    %v1010 = vsel %vm130, %v1003, 0
    %1012 = vmatprep.subr.mxu0 0.0
    %1013 = vmatpush1.xpose.msra.mxu0 0.0
    %1014 = vmatprep.subr.mxu0 0.0
    %1015 = vmatpush1.xpose.msra.mxu0 0.0
    %1016 = vmatprep.subr.mxu0 0.0
    %1017 = vmatpush1.xpose.msra.mxu0 0.0
    %1018 = vmatprep.subr.mxu0 0.0
    %1019 = vmatpush1.xpose.msra.mxu0 0.0
    %1020 = vmatprep.subr.mxu0 0.0
    %1021 = vmatpush1.xpose.msra.mxu0 0.0
    %1022 = vmatprep.subr.mxu0 0.0
    %1023 = vmatpush1.xpose.msra.mxu0 0.0
    %1024 = vmatprep.subr.mxu0 0.0
    %1025 = vmatpush1.xpose.msra.mxu0 0.0
    %1026 = vmatprep.subr.mxu0 0.0
    %1027 = vmatpush1.xpose.msra.mxu0 0.0
    %1028 = vmatprep.subr.mxu0 0.0
    %1029 = vmatpush1.xpose.msra.mxu0 0.0
    %1030 = vmatprep.subr.mxu0 0.0
    %1031 = vmatpush1.xpose.msra.mxu0 0.0
    %1032 = vmatprep.subr.mxu0 0.0
    %1033 = vmatpush1.xpose.msra.mxu0 0.0
    %1034 = vmatprep.subr.mxu0 0.0
    %1035 = vmatpush1.xpose.msra.mxu0 0.0
    %1036 = vmatprep.subr.mxu0 0.0
    %1037 = vmatpush1.xpose.msra.mxu0 0.0
    %1038 = vmatprep.subr.mxu0 0.0
    %1039 = vmatpush1.xpose.msra.mxu0 0.0
    %1040 = vmatprep.subr.mxu0 0.0
    %1041 = vmatpush1.xpose.msra.mxu0 0.0
    %1042 = vmatprep.subr.mxu0 0.0
    %1043 = vmatpush1.xpose.msra.mxu0 %v1010
    %1044 = vmatprep.subr.mxu0 0.0
    %1045 = vmatpush2.xpose.msra.mxu0 0.0
    %1046 = vmatprep.subr.mxu0 0.0
    %1047 = vmatpush2.xpose.msra.mxu0 0.0
    %1048 = vmatprep.subr.mxu0 0.0
    %1049 = vmatpush2.xpose.msra.mxu0 0.0
    %1050 = vmatprep.subr.mxu0 0.0
    %1051 = vmatpush2.xpose.msra.mxu0 0.0
    %1052 = vmatprep.subr.mxu0 0.0
    %1053 = vmatpush2.xpose.msra.mxu0 0.0
    %1054 = vmatprep.subr.mxu0 0.0
    %1055 = vmatpush2.xpose.msra.mxu0 0.0
    %1056 = vmatprep.subr.mxu0 0.0
    %1057 = vmatpush2.xpose.msra.mxu0 0.0
    %1058 = vmatprep.subr.mxu0 0.0
    %1059 = vmatpush2.xpose.msra.mxu0 0.0
    %1060 = vmatprep.subr.mxu0 0.0
    %1061 = vmatpush2.xpose.msra.mxu0 0.0
    %1062 = vmatprep.subr.mxu0 0.0
    %1063 = vmatpush2.xpose.msra.mxu0 0.0
    %1064 = vmatprep.subr.mxu0 0.0
    %1065 = vmatpush2.xpose.msra.mxu0 0.0
    %1066 = vmatprep.subr.mxu0 0.0
    %1067 = vmatpush2.xpose.msra.mxu0 0.0
    %1068 = vmatprep.subr.mxu0 0.0
    %1069 = vmatpush2.xpose.msra.mxu0 0.0
    %1070 = vmatprep.subr.mxu0 0.0
    %1071 = vmatpush2.xpose.msra.mxu0 0.0
    %1072 = vmatprep.subr.mxu0 0.0
    %1073 = vmatpush2.xpose.msra.mxu0 0.0
    %1074 = vmatprep.subr.mxu0 0.0
    %1075 = vmatpush2.xpose.msra.mxu0 0.0
    %1076 = vmatprep.mubr.f32.mxu0 0.0
    %1077 = vmatmul.mubr.f32.gmra.mxu0 %v1007
    %v1078 = vpop.f32.mrf.mxu0
    %v1079 = vadd.f32 0.0, %v1078
    %v1080 = vpop.f32.mrf.mxu0
    %1081 = vdwg.mxu0
    %vm1082 = vcmask 64512
    %v1083 = vsel %vm1082, %v1079, -inf
    %1084 = vmax.xlane.f32.xlu0 %v1083
    %v1085 = vpop.xlane.xlu0 %1084
    %v1086 = vsub.f32 %v1079, %v1085
    %v1087 = vmul.f32 %v1086, 1.442695
    %v1088 = vpow.pop %v1087
    %v1089 = vsel %vm1082, %v1088, 0.0
    %1090 = vadd.xlane.f32.xlu0 %v1089
    %v1091 = vpop.xlane.xlu0 %1090
    %v1092 = vrcp.pop %v1091
    %v1093 = vmul.f32 %v1091, %v1092
    %v1094 = vsub.f32 2.0, %v1093
    %v1095 = vmul.f32 %v1092, %v1094
    %v1096 = vmul.f32 %v1088, %v1095
    %v1098 = vsel %vm1082, %v1096, 0
    %1100 = vmatprep.subr.mxu0 0.0
    %1101 = vmatpush1.msra.mxu0 0.0
    %1102 = vmatprep.subr.mxu0 0.0
    %1103 = vmatpush1.msra.mxu0 0.0
    %1104 = vmatprep.subr.mxu0 0.0
    %1105 = vmatpush1.msra.mxu0 0.0
    %1106 = vmatprep.subr.mxu0 0.0
    %1107 = vmatpush1.msra.mxu0 0.0
    %1108 = vmatprep.subr.mxu0 0.0
    %1109 = vmatpush1.msra.mxu0 0.0
    %1110 = vmatprep.subr.mxu0 0.0
    %1111 = vmatpush1.msra.mxu0 0.0
    %1112 = vmatprep.subr.mxu0 0.0
    %1113 = vmatpush1.msra.mxu0 0.0
    %1114 = vmatprep.subr.mxu0 0.0
    %1115 = vmatpush1.msra.mxu0 0.0
    %1116 = vmatprep.subr.mxu0 0.0
    %1117 = vmatpush1.msra.mxu0 0.0
    %1118 = vmatprep.subr.mxu0 0.0
    %1119 = vmatpush1.msra.mxu0 0.0
    %1120 = vmatprep.subr.mxu0 0.0
    %1121 = vmatpush1.msra.mxu0 0.0
    %1122 = vmatprep.subr.mxu0 0.0
    %1123 = vmatpush1.msra.mxu0 0.0
    %1124 = vmatprep.subr.mxu0 0.0
    %1125 = vmatpush1.msra.mxu0 0.0
    %1126 = vmatprep.subr.mxu0 0.0
    %1127 = vmatpush1.msra.mxu0 0.0
    %1128 = vmatprep.subr.mxu0 0.0
    %1129 = vmatpush1.msra.mxu0 0.0
    %1130 = vmatprep.subr.mxu0 0.0
    %1131 = vmatpush1.msra.mxu0 %v771
    %1132 = vmatprep.subr.mxu0 0.0
    %1133 = vmatpush2.msra.mxu0 0.0
    %1134 = vmatprep.subr.mxu0 0.0
    %1135 = vmatpush2.msra.mxu0 0.0
    %1136 = vmatprep.subr.mxu0 0.0
    %1137 = vmatpush2.msra.mxu0 0.0
    %1138 = vmatprep.subr.mxu0 0.0
    %1139 = vmatpush2.msra.mxu0 0.0
    %1140 = vmatprep.subr.mxu0 0.0
    %1141 = vmatpush2.msra.mxu0 0.0
    %1142 = vmatprep.subr.mxu0 0.0
    %1143 = vmatpush2.msra.mxu0 0.0
    %1144 = vmatprep.subr.mxu0 0.0
    %1145 = vmatpush2.msra.mxu0 0.0
    %1146 = vmatprep.subr.mxu0 0.0
    %1147 = vmatpush2.msra.mxu0 0.0
    %1148 = vmatprep.subr.mxu0 0.0
    %1149 = vmatpush2.msra.mxu0 0.0
    %1150 = vmatprep.subr.mxu0 0.0
    %1151 = vmatpush2.msra.mxu0 0.0
    %1152 = vmatprep.subr.mxu0 0.0
    %1153 = vmatpush2.msra.mxu0 0.0
    %1154 = vmatprep.subr.mxu0 0.0
    %1155 = vmatpush2.msra.mxu0 0.0
    %1156 = vmatprep.subr.mxu0 0.0
    %1157 = vmatpush2.msra.mxu0 0.0
    %1158 = vmatprep.subr.mxu0 0.0
    %1159 = vmatpush2.msra.mxu0 0.0
    %1160 = vmatprep.subr.mxu0 0.0
    %1161 = vmatpush2.msra.mxu0 0.0
    %1162 = vmatprep.subr.mxu0 0.0
    %1163 = vmatpush2.msra.mxu0 0.0
    %1164 = vmatprep.mubr.f32.mxu0 0.0
    %1165 = vmatmul.mubr.f32.gmra.mxu0 %v1098
    %v1166 = vpop.f32.mrf.mxu0
    %v1167 = vadd.f32 0.0, %v1166
    %v1168 = vpop.f32.mrf.mxu0
    %1169 = vdwg.mxu0
    %v1171 = vsel %vm130, %v1167, 0
    %1173 = vmatprep.subr.mxu0 0.0
    %1174 = vmatpush1.msra.mxu0 0.0
    %1175 = vmatprep.subr.mxu0 0.0
    %1176 = vmatpush1.msra.mxu0 0.0
    %1177 = vmatprep.subr.mxu0 0.0
    %1178 = vmatpush1.msra.mxu0 0.0
    %1179 = vmatprep.subr.mxu0 0.0
    %1180 = vmatpush1.msra.mxu0 0.0
    %1181 = vmatprep.subr.mxu0 0.0
    %1182 = vmatpush1.msra.mxu0 0.0
    %1183 = vmatprep.subr.mxu0 0.0
    %1184 = vmatpush1.msra.mxu0 0.0
    %1185 = vmatprep.subr.mxu0 0.0
    %1186 = vmatpush1.msra.mxu0 0.0
    %1187 = vmatprep.subr.mxu0 0.0
    %1188 = vmatpush1.msra.mxu0 0.0
    %1189 = vmatprep.subr.mxu0 0.0
    %1190 = vmatpush1.msra.mxu0 0.0
    %1191 = vmatprep.subr.mxu0 0.0
    %1192 = vmatpush1.msra.mxu0 0.0
    %1193 = vmatprep.subr.mxu0 0.0
    %1194 = vmatpush1.msra.mxu0 0.0
    %1195 = vmatprep.subr.mxu0 0.0
    %1196 = vmatpush1.msra.mxu0 0.0
    %1197 = vmatprep.subr.mxu0 0.0
    %1198 = vmatpush1.msra.mxu0 %v47
    %1199 = vmatprep.subr.mxu0 0.0
    %1200 = vmatpush1.msra.mxu0 %v46
    %1201 = vmatprep.subr.mxu0 0.0
    %1202 = vmatpush1.msra.mxu0 %v45
    %1203 = vmatprep.subr.mxu0 0.0
    %1204 = vmatpush1.msra.mxu0 %v44
    %1205 = vmatprep.subr.mxu0 0.0
    %1206 = vmatpush2.msra.mxu0 0.0
    %1207 = vmatprep.subr.mxu0 0.0
    %1208 = vmatpush2.msra.mxu0 0.0
    %1209 = vmatprep.subr.mxu0 0.0
    %1210 = vmatpush2.msra.mxu0 0.0
    %1211 = vmatprep.subr.mxu0 0.0
    %1212 = vmatpush2.msra.mxu0 0.0
    %1213 = vmatprep.subr.mxu0 0.0
    %1214 = vmatpush2.msra.mxu0 0.0
    %1215 = vmatprep.subr.mxu0 0.0
    %1216 = vmatpush2.msra.mxu0 0.0
    %1217 = vmatprep.subr.mxu0 0.0
    %1218 = vmatpush2.msra.mxu0 0.0
    %1219 = vmatprep.subr.mxu0 0.0
    %1220 = vmatpush2.msra.mxu0 0.0
    %1221 = vmatprep.subr.mxu0 0.0
    %1222 = vmatpush2.msra.mxu0 0.0
    %1223 = vmatprep.subr.mxu0 0.0
    %1224 = vmatpush2.msra.mxu0 0.0
    %1225 = vmatprep.subr.mxu0 0.0
    %1226 = vmatpush2.msra.mxu0 0.0
    %1227 = vmatprep.subr.mxu0 0.0
    %1228 = vmatpush2.msra.mxu0 0.0
    %1229 = vmatprep.subr.mxu0 0.0
    %1230 = vmatpush2.msra.mxu0 0.0
    %1231 = vmatprep.subr.mxu0 0.0
    %1232 = vmatpush2.msra.mxu0 0.0
    %1233 = vmatprep.subr.mxu0 0.0
    %1234 = vmatpush2.msra.mxu0 0.0
    %1235 = vmatprep.subr.mxu0 0.0
    %1236 = vmatpush2.msra.mxu0 0.0
    %1237 = vmatprep.mubr.f32.mxu0 0.0
    %1238 = vmatmul.mubr.f32.gmra.mxu0 %v1007
    %v1239 = vpop.f32.mrf.mxu0
    %v1240 = vadd.f32 0.0, %v1239
    %v1241 = vpop.f32.mrf.mxu0
    %1242 = vmatprep.mubr.f32.mxu0 0.0
    %1243 = vmatmul.mubr.f32.gmra.mxu0 %v1171
    %v1244 = vpop.f32.mrf.mxu0
    %v1245 = vadd.f32 0.0, %v1244
    %v1246 = vpop.f32.mrf.mxu0
    %1247 = vdwg.mxu0
    %1249 = vrot.lane.b32.xlu0 %v1245, 112
    %v1250 = vpop.permute.xlu0 %1249
    %v1252 = vadd.f32 %v1240, %v1250
    %v1253 = vlaneseq
    %v1254 = vshrl.u32 %v1253, 7
    %v1255 = vsub.s32 0, %v1254
    %v1256 = vrot.slane %v51, %v1255
    %v1257 = vadd.f32 %v1252, %v1256
    %1258 = vst [vmem:[%s2] sm:$0xff] 0.0
    %1259 = vst [vmem:[%s2 + $0x8] sm:$0xff] 0.0
    %1260 = vst.msk [vmem:[%s2] sm:$0xff] %vm56, %v1257
    %1261 = vst.msk [vmem:[%s2 + $0x8] sm:$0xff] %vm1082, %v1096
    // Predicated region
    $region14: #{attention_forward.1} parent=1 // pred_check
      _
    $region15: #{attention_forward.1} parent=1 // pred_check_branch
      %1263 = sbr.rel (0) target = $region17
    $region16: #{attention_forward.1} parent=1 // pred_region
      _
    $region17: #{attention_forward.1} parent=1 // pred_fallthru
      _
    // Predicated region
    $region18: #{attention_forward.1} parent=1 // pred_check
      _
    $region19: #{attention_forward.1} parent=1 // pred_check_branch
      %1265 = sbr.rel (0) target = $region21
    $region20: #{attention_forward.1} parent=1 // pred_region
      _
    $region21: #{attention_forward.1} parent=1 // pred_fallthru
      _
    %1266 = vsyncpa [#allocation3], 1

</llo_original>
